<compile_context>
chip_gen: v7x
topology: tpu7x:2x2x1
jax: 0.10.0
libtpu: 0.0.40
codegen_flags: <defaults>
</compile_context>

<pallas_src>
import functools

import jax
import jax.numpy as jnp
import numpy as np
from jax.experimental import pallas as pl
from jax.experimental.pallas import tpu as pltpu


def _attention_kernel(enc_ref, dec_ref, we_ref, wd_ref, bsum_ref, wf_ref,
                      out_ref):
    """One block of `block_b` batch elements per grid step.

    enc_ref  : (Bblk*N, E)  encoder features, flattened in the wrapper
    dec_ref  : (Bblk, D)    decoder hidden states
    we_ref   : (E, A)       encoder_att weight, pre-transposed (x @ W)
    wd_ref   : (D, A)       decoder_att weight, pre-transposed
    bsum_ref : (1, A)       b_enc + b_dec (folded in the wrapper)
    wf_ref   : (1, A)       full_att weight as a row vector
    out_ref  : (Bblk, N)    softmax weights over the N *unique* rows
    """
    bblk, n = out_ref.shape
    a = we_ref.shape[1]

    # Encoder projection over the N unique rows only (the torch .repeat(1,2,1)
    # merely duplicates them; duplication is re-introduced in the wrapper).
    # Single MXU issue on the already-flattened (Bblk*N, E) block.
    wh = jnp.dot(enc_ref[...], we_ref[...],
                 preferred_element_type=jnp.float32)              # (Bblk*N, A)

    # Decoder projection for the whole batch block in one matmul.  The torch
    # .repeat(1, E, 1) produces E identical rows, so broadcasting one row per
    # batch element reproduces it exactly.  b_enc + b_dec added once here.
    us = jnp.dot(dec_ref[...], wd_ref[...],
                 preferred_element_type=jnp.float32) + bsum_ref[...]  # (Bblk, A)

    # relu(Us + Wh); the leading-dim split of wh is tile-aligned (cheap).
    s = jnp.maximum(wh.reshape(bblk, n, a) + us[:, None, :], 0.0)

    # full_att: width-1 matmul -> VPU multiply + lane reduce.
    # b_full is exactly shift-invariant under the softmax -> dropped.
    f = jnp.sum(s * wf_ref[...].reshape(1, 1, a), axis=-1)        # (Bblk, N)

    # softmax over the duplicated 2N rows == softmax over the N unique rows / 2
    m = jnp.max(f, axis=-1, keepdims=True)
    ex = jnp.exp(f - m)
    denom = 2.0 * jnp.sum(ex, axis=-1, keepdims=True)
    out_ref[...] = (ex / denom).astype(out_ref.dtype)             # exact norm


def _auto_block_b(B, N, E, D, A, vmem_budget_bytes):
    """Pick block_b: multiple of 8, sized to VMEM, >= 2 grid steps if possible."""
    per_b = (N * E + D + N) * 4 * 2            # double-buffered per-batch tiles
    fixed = (E * A + D * A + 2 * A) * 4 * 2    # weights / biases (double-buffered)
    budget = max(vmem_budget_bytes - fixed, per_b * 8)
    bb = max(8, (budget // per_b) // 8 * 8)
    half = pl.cdiv(B, 2)                       # keep nb >= 2 for megacore sharding
    half = max(8, pl.cdiv(half, 8) * 8)
    return int(min(bb, half))


@functools.partial(jax.jit, static_argnames=("block_b",))
def attention_forward(encoder_out, decoder_hidden,
                      W_enc, b_enc, W_dec, b_dec, W_full, b_full,
                      block_b=None):
    """encoder_out: (B, N, E)   decoder_hidden: (B, D)
    Weights in PyTorch nn.Linear convention: W_enc (A, E), W_dec (A, D),
    W_full (1, A).  Returns (B, 2N, 1) float32."""
    B, N, E = encoder_out.shape
    D = decoder_hidden.shape[-1]
    A = W_enc.shape[0]
    assert E == 2 * N, "skeleton module requires encoder_dim == 2 * num_pixels"

    # Tile-size policy: ~12 MiB of per-step tiles fits every generation's
    # scoped VMEM (v5e 16 MiB default, v6e/v7x 32 MiB), leaving headroom.
    if block_b is None:
        block_b = _auto_block_b(B, N, E, D, A, vmem_budget_bytes=12 << 20)

    nb = pl.cdiv(B, block_b)
    B_pad = nb * block_b
    if B_pad != B:
        pad = B_pad - B
        encoder_out = jnp.pad(encoder_out, ((0, pad), (0, 0), (0, 0)))
        decoder_hidden = jnp.pad(decoder_hidden, ((0, pad), (0, 0)))

    # Glue (all free / tiny in the wrapper):
    #   flatten encoder_out so the kernel never merge-reshapes its biggest
    #   activation; pre-transpose weights so the kernel does x @ W; fold the
    #   two attention biases; drop b_full (shift-invariant under softmax).
    enc_flat = encoder_out.reshape(B_pad * N, E).astype(jnp.float32)
    dec = decoder_hidden.astype(jnp.float32)
    we_t = W_enc.T.astype(jnp.float32)                  # (E, A)
    wd_t = W_dec.T.astype(jnp.float32)                  # (D, A)
    b_sum = (b_enc + b_dec).reshape(1, A).astype(jnp.float32)
    wf = W_full.reshape(1, A).astype(jnp.float32)
    # TODO(synk): optional bf16 streaming of enc/weights (halves HBM traffic on
    # v6e/v7x) kept off to preserve tight f32 agreement with the reference.

    cost = pl.CostEstimate(
        flops=2 * B_pad * N * E * A + 2 * B_pad * D * A + 2 * B_pad * N * A,
        transcendentals=B_pad * N,
        bytes_accessed=4 * (B_pad * N * E + B_pad * D + B_pad * N
                            + E * A + D * A + 2 * A),
    )

    out2d = pl.pallas_call(
        _attention_kernel,
        out_shape=jax.ShapeDtypeStruct((B_pad, N), jnp.float32),
        grid_spec=pltpu.PrefetchScalarGridSpec(
            num_scalar_prefetch=0,
            grid=(nb,),
            in_specs=[
                pl.BlockSpec((block_b * N, E), lambda b: (b, 0)),  # enc (flat)
                pl.BlockSpec((block_b, D), lambda b: (b, 0)),      # dec
                pl.BlockSpec((E, A), lambda b: (0, 0)),            # W_enc^T
                pl.BlockSpec((D, A), lambda b: (0, 0)),            # W_dec^T
                pl.BlockSpec((1, A), lambda b: (0, 0)),            # b_enc+b_dec
                pl.BlockSpec((1, A), lambda b: (0, 0)),            # W_full row
            ],
            out_specs=pl.BlockSpec((block_b, N), lambda b: (b, 0)),
        ),
        compiler_params=pltpu.CompilerParams(
            dimension_semantics=("parallel",),
            vmem_limit_bytes=32 * 1024 * 1024),
        cost_estimate=cost,
    )(enc_flat, dec, we_t, wd_t, b_sum, wf)

    # Wrapper-side duplication + trailing singleton: exact, and keeps the
    # kernel's output writes to the N unique columns only.
    p = out2d[:B]                                        # (B, N)
    return jnp.concatenate([p, p], axis=1)[:, :, None]   # (B, 2N, 1)


def attention_reference(encoder_out, decoder_hidden,
                        W_enc, b_enc, W_dec, b_dec, W_full, b_full):
    """Pure-JAX mirror of the PyTorch forward, for correctness checking."""
    E = encoder_out.shape[2]
    x1 = jnp.tile(encoder_out, (1, 2, 1))                      # repeat(1,2,1)
    wh = x1 @ W_enc.T + b_enc
    x2 = jnp.repeat(decoder_hidden[:, None, :], E, axis=1)     # repeat(1,E,1)
    us = x2 @ W_dec.T + b_dec
    s = jnp.maximum(us + wh, 0.0)
    form = s @ W_full.T + b_full
    return jax.nn.softmax(form, axis=1)


def _init_linear(key, out_dim, in_dim):
    """Deterministic init matching torch.nn.Linear's uniform(-1/sqrt(in), ...)."""
    kw, kb = jax.random.split(key)
    bound = 1.0 / np.sqrt(in_dim)
    W = jax.random.uniform(kw, (out_dim, in_dim), jnp.float32, -bound, bound)
    b = jax.random.uniform(kb, (out_dim,), jnp.float32, -bound, bound)
    return W, b


if __name__ == "__main__":
    # Small shapes consistent with the module: the skeleton's forward only
    # type-checks when encoder_dim == 2 * num_pixels.
    B = 16         # batch (-> 2 parallel grid steps with auto block_b=8)
    N = 8          # num "pixels" (encoder_out.size(1))
    E = 2 * N      # encoder_dim = 16
    D = 32         # decoder_dim
    A = 32         # attention_dim

    key = jax.random.PRNGKey(0)
    k_enc, k_dec, k_full, k_x, k_h = jax.random.split(key, 5)

    W_enc, b_enc = _init_linear(k_enc, A, E)
    W_dec, b_dec = _init_linear(k_dec, A, D)
    W_full, b_full = _init_linear(k_full, 1, A)

    encoder_out = jax.random.normal(k_x, (B, N, E), jnp.float32)
    decoder_hidden = jax.random.normal(k_h, (B, D), jnp.float32)

    out = attention_forward(encoder_out, decoder_hidden,
                            W_enc, b_enc, W_dec, b_dec, W_full, b_full)
    out = jax.block_until_ready(out)

    ref = attention_reference(encoder_out, decoder_hidden,
                              W_enc, b_enc, W_dec, b_dec, W_full, b_full)
    np.testing.assert_allclose(np.asarray(out), np.asarray(ref),
                               rtol=1e-4, atol=1e-6)
    assert out.shape == (B, 2 * N, 1)
    print("KERNEL_OK")
</pallas_src>

<mosaic_0001>
module attributes {stable_mosaic.version = 11 : i64} {
  func.func @_attention_kernel(%arg0: i32, %arg1: memref<64x16xf32, #tpu.memory_space<vmem>>, %arg2: memref<8x32xf32, #tpu.memory_space<vmem>>, %arg3: memref<16x32xf32, #tpu.memory_space<vmem>>, %arg4: memref<32x32xf32, #tpu.memory_space<vmem>>, %arg5: memref<1x32xf32, #tpu.memory_space<vmem>>, %arg6: memref<1x32xf32, #tpu.memory_space<vmem>>, %arg7: memref<8x8xf32, #tpu.memory_space<vmem>>) attributes {dimension_semantics = [#tpu.dimension_semantics<parallel>], iteration_bounds = array<i64: 2>, scalar_prefetch = 0 : i64, scratch_operands = 0 : i64, tpu.core_type = #tpu.core_type<tc>, window_params = [{transform_indices = @transform_0, window_bounds = array<i64: 64, 16>}, {transform_indices = @transform_1, window_bounds = array<i64: 8, 32>}, {pipeline_mode = #tpu.pipeline_mode<synchronous>, transform_indices = @transform_2, window_bounds = array<i64: 16, 32>}, {pipeline_mode = #tpu.pipeline_mode<synchronous>, transform_indices = @transform_3, window_bounds = array<i64: 32, 32>}, {pipeline_mode = #tpu.pipeline_mode<synchronous>, transform_indices = @transform_4, window_bounds = array<i64: 1, 32>}, {pipeline_mode = #tpu.pipeline_mode<synchronous>, transform_indices = @transform_5, window_bounds = array<i64: 1, 32>}, {transform_indices = @transform_6, window_bounds = array<i64: 8, 8>}]} {
    %c0 = arith.constant 0 : index
    %c0_0 = arith.constant 0 : index
    %0 = vector.load %arg1[%c0, %c0_0] : memref<64x16xf32, #tpu.memory_space<vmem>>, vector<64x16xf32>
    %c0_1 = arith.constant 0 : index
    %c0_2 = arith.constant 0 : index
    %1 = vector.load %arg3[%c0_1, %c0_2] : memref<16x32xf32, #tpu.memory_space<vmem>>, vector<16x32xf32>
    %cst = arith.constant dense<0.000000e+00> : vector<64x32xf32>
    %2 = tpu.matmul %0, %1, %cst {dimension_numbers = #tpu.dot_dimension_numbers<[1], [0], [0], [1], [0, 0, 1, 1], [], []>} : vector<64x16xf32>, vector<16x32xf32>, vector<64x32xf32> -> vector<64x32xf32>
    %c0_3 = arith.constant 0 : index
    %c0_4 = arith.constant 0 : index
    %3 = vector.load %arg2[%c0_3, %c0_4] : memref<8x32xf32, #tpu.memory_space<vmem>>, vector<8x32xf32>
    %c0_5 = arith.constant 0 : index
    %c0_6 = arith.constant 0 : index
    %4 = vector.load %arg4[%c0_5, %c0_6] : memref<32x32xf32, #tpu.memory_space<vmem>>, vector<32x32xf32>
    %cst_7 = arith.constant dense<0.000000e+00> : vector<8x32xf32>
    %5 = tpu.matmul %3, %4, %cst_7 {dimension_numbers = #tpu.dot_dimension_numbers<[1], [0], [0], [1], [0, 0, 1, 1], [], []>} : vector<8x32xf32>, vector<32x32xf32>, vector<8x32xf32> -> vector<8x32xf32>
    %c0_8 = arith.constant 0 : index
    %c0_9 = arith.constant 0 : index
    %6 = vector.load %arg5[%c0_8, %c0_9] : memref<1x32xf32, #tpu.memory_space<vmem>>, vector<1x32xf32>
    %7 = vector.broadcast %6 : vector<1x32xf32> to vector<8x32xf32>
    %8 = arith.addf %5, %7 : vector<8x32xf32>
    %9 = vector.shape_cast %2 : vector<64x32xf32> to vector<8x8x32xf32>
    %10 = vector.shape_cast %8 : vector<8x32xf32> to vector<8x1x32xf32>
    %11 = vector.broadcast %10 : vector<8x1x32xf32> to vector<8x8x32xf32>
    %12 = arith.addf %9, %11 : vector<8x8x32xf32>
    %cst_10 = arith.constant 0.000000e+00 : f32
    %13 = vector.broadcast %cst_10 : f32 to vector<8x8x32xf32>
    %14 = arith.maximumf %12, %13 : vector<8x8x32xf32>
    %c0_11 = arith.constant 0 : index
    %c0_12 = arith.constant 0 : index
    %15 = vector.load %arg6[%c0_11, %c0_12] : memref<1x32xf32, #tpu.memory_space<vmem>>, vector<1x32xf32>
    %16 = vector.shape_cast %15 : vector<1x32xf32> to vector<1x1x32xf32>
    %17 = vector.broadcast %16 : vector<1x1x32xf32> to vector<8x8x32xf32>
    %18 = arith.mulf %14, %17 : vector<8x8x32xf32>
    %cst_13 = arith.constant dense<0.000000e+00> : vector<8x8xf32>
    %19 = vector.multi_reduction <add>, %18, %cst_13 [2] : vector<8x8x32xf32> to vector<8x8xf32>
    %cst_14 = arith.constant dense<0xFF800000> : vector<8xf32>
    %20 = vector.multi_reduction <maximumf>, %19, %cst_14 [1] : vector<8x8xf32> to vector<8xf32>
    %21 = vector.shape_cast %20 : vector<8xf32> to vector<8x1xf32>
    %22 = vector.broadcast %21 : vector<8x1xf32> to vector<8x8xf32>
    %23 = arith.subf %19, %22 : vector<8x8xf32>
    %24 = math.exp %23 : vector<8x8xf32>
    %cst_15 = arith.constant dense<0.000000e+00> : vector<8xf32>
    %25 = vector.multi_reduction <add>, %24, %cst_15 [1] : vector<8x8xf32> to vector<8xf32>
    %26 = vector.shape_cast %25 : vector<8xf32> to vector<8x1xf32>
    %cst_16 = arith.constant 2.000000e+00 : f32
    %27 = vector.broadcast %cst_16 : f32 to vector<8x1xf32>
    %28 = arith.mulf %27, %26 : vector<8x1xf32>
    %29 = vector.broadcast %28 : vector<8x1xf32> to vector<8x8xf32>
    %30 = arith.divf %24, %29 : vector<8x8xf32>
    %c0_17 = arith.constant 0 : index
    %c0_18 = arith.constant 0 : index
    %31 = vector.load %arg7[%c0_17, %c0_18] : memref<8x8xf32, #tpu.memory_space<vmem>>, vector<8x8xf32>
    tpu.vector_store %arg7[%c0_17, %c0_18], %30 {strides = array<i32>} : memref<8x8xf32, #tpu.memory_space<vmem>>, vector<8x8xf32>,
    return
  }
  func.func @transform_0(%arg0: i32) -> (i32, i32) {
    %c0_i32 = arith.constant 0 : i32
    %c0_i32_0 = arith.constant 0 : i32
    return %arg0, %c0_i32 : i32, i32
  }
  func.func @transform_1(%arg0: i32) -> (i32, i32) {
    %c0_i32 = arith.constant 0 : i32
    %c0_i32_0 = arith.constant 0 : i32
    return %arg0, %c0_i32 : i32, i32
  }
  func.func @transform_2(%arg0: i32) -> (i32, i32) {
    %c0_i32 = arith.constant 0 : i32
    %c0_i32_0 = arith.constant 0 : i32
    %c0_i32_1 = arith.constant 0 : i32
    return %c0_i32, %c0_i32_0 : i32, i32
  }
  func.func @transform_3(%arg0: i32) -> (i32, i32) {
    %c0_i32 = arith.constant 0 : i32
    %c0_i32_0 = arith.constant 0 : i32
    %c0_i32_1 = arith.constant 0 : i32
    return %c0_i32, %c0_i32_0 : i32, i32
  }
  func.func @transform_4(%arg0: i32) -> (i32, i32) {
    %c0_i32 = arith.constant 0 : i32
    %c0_i32_0 = arith.constant 0 : i32
    %c0_i32_1 = arith.constant 0 : i32
    return %c0_i32, %c0_i32_0 : i32, i32
  }
  func.func @transform_5(%arg0: i32) -> (i32, i32) {
    %c0_i32 = arith.constant 0 : i32
    %c0_i32_0 = arith.constant 0 : i32
    %c0_i32_1 = arith.constant 0 : i32
    return %c0_i32, %c0_i32_0 : i32, i32
  }
  func.func @transform_6(%arg0: i32) -> (i32, i32) {
    %c0_i32 = arith.constant 0 : i32
    %c0_i32_0 = arith.constant 0 : i32
    return %arg0, %c0_i32 : i32, i32
  }
}

</mosaic_0001>

<llo_original>
// kernel: attention_forward.1
$region0: #{attention_forward.1}
  #allocation0 [shape = 'u32[]', space=smem, size = 0x4, offset = 0x4, fixed_abs, tag = 'smem constant byte address 0x4 - core index']
  #allocation1 [shape = 'u32[144,128]{1,0:T(1,128)}', space=vmem, size = 0x12000, scoped, tag = 'internal scratch']
  %s0 = inlined_call_operand.hbm [shape: f32[128,16], index: 0, kind: input, shape index: {}]
  %s1 = inlined_call_operand.vmem [shape: f32[16,32], index: 1, kind: input, shape index: {}]
  %s2 = inlined_call_operand.vmem [shape: f32[16,32], index: 2, kind: input, shape index: {}]
  %s3 = inlined_call_operand.vmem [shape: f32[32,32], index: 3, kind: input, shape index: {}]
  %s4 = inlined_call_operand.vmem [shape: f32[1,32], index: 4, kind: input, shape index: {}]
  %s5 = inlined_call_operand.vmem [shape: f32[1,32], index: 5, kind: input, shape index: {}]
  %s6 = inlined_call_operand.vmem [shape: f32[16,8], index: 6, kind: output, shape index: {}]
  %s7 = sld [smem:[#allocation0]]
  $region61: #{attention_forward.1} parent=0
    _
  %s9 = ssub.s32 1, %s7
  %s10 = scalar_select 0, %s9, %s7
  $region1: #{attention_forward.1} parent=0
    #allocation2 [shape = 'u8[65536]{0}', space=vmem, size = 0x10000, scoped, tag = 'input window, operand 0']
    #allocation3 [shape = 's32[2]{0}', space=sflag, size = 0x8, scoped, tag = 'scoped memory for attention_forward.1']
    %11 = vsyncpa [#allocation3], 0
    %s12 = scalar_lea.sflag [#allocation3], 1
    %13 = vsyncpa %s12, 0
    loop: start=0, step=1, limit=4
    $region2: #{attention_forward.1} parent=1 // loop_pre_header
      _
    $region3: #{attention_forward.1} parent=1 // loop_header
      %s15 = sphi 0, %s19
      %p16 = scmp.ge.s32.totalorder %s15, 4
      %s25 = sphi 0, %s27
      %s28 = sphi 0, %s25
      %s29 = sphi 0, %s28
      %s45 = sphi 0, %s29
      %s51 = sphi 0, %s53
      %s54 = sphi 0, %s51
      %s55 = sphi 0, %s54
      %s71 = sphi 0, %s55
      %s75 = sphi 0, %s75
      %s77 = sphi 0, %s75
      %s78 = sphi 0, %s77
      %s92 = sphi 0, %s78
      %s96 = sphi 0, %s96
      %s98 = sphi 0, %s96
      %s99 = sphi 0, %s98
      %s113 = sphi 0, %s99
      %s117 = sphi 0, %s117
      %s119 = sphi 0, %s117
      %s120 = sphi 0, %s119
      %s134 = sphi 0, %s120
      %s138 = sphi 0, %s138
      %s140 = sphi 0, %s138
      %s141 = sphi 0, %s140
      %s155 = sphi 0, %s141
      %s161 = sphi 0, %s163
      %s164 = sphi 0, %s161
      %s165 = sphi 0, %s164
      %s181 = sphi 0, %s165
    $region4: #{attention_forward.1} parent=1 // loop_header_branch
      %18 = sbr.rel (%p16) target = $region8
    $region5: #{attention_forward.1} parent=1 // loop_body
      %s20 = ssub.s32 %s15, 1
      %s21 = ssub.s32 %s15, 2
      %s22 = sadd.s32 %s15, 1
      %s23 = ssub.s32 %s15, %s22
      %p24 = scmp.eq.s32.totalorder %s23, 0
      %s26 = sadd.s32 %s25, 1
      %s27 = scalar_select %p24, %s25, %s26
      %p30 = pneg %p24
      %p31 = scmp.eq.s32.totalorder %s15, 1
      %p32 = por %p30, %p31
      %p33 = scmp.ne.s32.totalorder %s25, %s28
      %p34 = scmp.eq.s32.totalorder %s15, 0
      %p35 = por %p33, %p34
      %p36 = scmp.ne.s32.totalorder %s25, %s28
      %p37 = scmp.eq.s32.totalorder %s20, 1
      %p38 = por %p36, %p37
      %p39 = scmp.ne.s32.totalorder %s28, %s29
      %p40 = scmp.eq.s32.totalorder %s20, 0
      %p41 = por %p39, %p40
      %p42 = scmp.ne.s32.totalorder %s28, %s29
      %p43 = scmp.eq.s32.totalorder %s21, 1
      %p44 = por %p42, %p43
      %p46 = scmp.ne.s32.totalorder %s29, %s45
      %p47 = scmp.eq.s32.totalorder %s21, 0
      %p48 = por %p46, %p47
      %s49 = ssub.s32 %s15, %s22
      %p50 = scmp.eq.s32.totalorder %s49, 0
      %s52 = sadd.s32 %s51, 1
      %s53 = scalar_select %p50, %s51, %s52
      %p56 = pneg %p50
      %p57 = scmp.eq.s32.totalorder %s15, 1
      %p58 = por %p56, %p57
      %p59 = scmp.ne.s32.totalorder %s51, %s54
      %p60 = scmp.eq.s32.totalorder %s15, 0
      %p61 = por %p59, %p60
      %p62 = scmp.ne.s32.totalorder %s51, %s54
      %p63 = scmp.eq.s32.totalorder %s20, 1
      %p64 = por %p62, %p63
      %p65 = scmp.ne.s32.totalorder %s54, %s55
      %p66 = scmp.eq.s32.totalorder %s20, 0
      %p67 = por %p65, %p66
      %p68 = scmp.ne.s32.totalorder %s54, %s55
      %p69 = scmp.eq.s32.totalorder %s21, 1
      %p70 = por %p68, %p69
      %p72 = scmp.ne.s32.totalorder %s55, %s71
      %p73 = scmp.eq.s32.totalorder %s21, 0
      %p74 = por %p72, %p73
      %s76 = sadd.s32 %s75, 1
      %p79 = scmp.eq.s32.totalorder %s15, 1
      %p80 = scmp.ne.s32.totalorder %s75, %s77
      %p81 = scmp.eq.s32.totalorder %s15, 0
      %p82 = por %p80, %p81
      %p83 = scmp.ne.s32.totalorder %s75, %s77
      %p84 = scmp.eq.s32.totalorder %s20, 1
      %p85 = por %p83, %p84
      %p86 = scmp.ne.s32.totalorder %s77, %s78
      %p87 = scmp.eq.s32.totalorder %s20, 0
      %p88 = por %p86, %p87
      %p89 = scmp.ne.s32.totalorder %s77, %s78
      %p90 = scmp.eq.s32.totalorder %s21, 1
      %p91 = por %p89, %p90
      %p93 = scmp.ne.s32.totalorder %s78, %s92
      %p94 = scmp.eq.s32.totalorder %s21, 0
      %p95 = por %p93, %p94
      %s97 = sadd.s32 %s96, 1
      %p100 = scmp.eq.s32.totalorder %s15, 1
      %p101 = scmp.ne.s32.totalorder %s96, %s98
      %p102 = scmp.eq.s32.totalorder %s15, 0
      %p103 = por %p101, %p102
      %p104 = scmp.ne.s32.totalorder %s96, %s98
      %p105 = scmp.eq.s32.totalorder %s20, 1
      %p106 = por %p104, %p105
      %p107 = scmp.ne.s32.totalorder %s98, %s99
      %p108 = scmp.eq.s32.totalorder %s20, 0
      %p109 = por %p107, %p108
      %p110 = scmp.ne.s32.totalorder %s98, %s99
      %p111 = scmp.eq.s32.totalorder %s21, 1
      %p112 = por %p110, %p111
      %p114 = scmp.ne.s32.totalorder %s99, %s113
      %p115 = scmp.eq.s32.totalorder %s21, 0
      %p116 = por %p114, %p115
      %s118 = sadd.s32 %s117, 1
      %p121 = scmp.eq.s32.totalorder %s15, 1
      %p122 = scmp.ne.s32.totalorder %s117, %s119
      %p123 = scmp.eq.s32.totalorder %s15, 0
      %p124 = por %p122, %p123
      %p125 = scmp.ne.s32.totalorder %s117, %s119
      %p126 = scmp.eq.s32.totalorder %s20, 1
      %p127 = por %p125, %p126
      %p128 = scmp.ne.s32.totalorder %s119, %s120
      %p129 = scmp.eq.s32.totalorder %s20, 0
      %p130 = por %p128, %p129
      %p131 = scmp.ne.s32.totalorder %s119, %s120
      %p132 = scmp.eq.s32.totalorder %s21, 1
      %p133 = por %p131, %p132
      %p135 = scmp.ne.s32.totalorder %s120, %s134
      %p136 = scmp.eq.s32.totalorder %s21, 0
      %p137 = por %p135, %p136
      %s139 = sadd.s32 %s138, 1
      %p142 = scmp.eq.s32.totalorder %s15, 1
      %p143 = scmp.ne.s32.totalorder %s138, %s140
      %p144 = scmp.eq.s32.totalorder %s15, 0
      %p145 = por %p143, %p144
      %p146 = scmp.ne.s32.totalorder %s138, %s140
      %p147 = scmp.eq.s32.totalorder %s20, 1
      %p148 = por %p146, %p147
      %p149 = scmp.ne.s32.totalorder %s140, %s141
      %p150 = scmp.eq.s32.totalorder %s20, 0
      %p151 = por %p149, %p150
      %p152 = scmp.ne.s32.totalorder %s140, %s141
      %p153 = scmp.eq.s32.totalorder %s21, 1
      %p154 = por %p152, %p153
      %p156 = scmp.ne.s32.totalorder %s141, %s155
      %p157 = scmp.eq.s32.totalorder %s21, 0
      %p158 = por %p156, %p157
      %s159 = ssub.s32 %s15, %s22
      %p160 = scmp.eq.s32.totalorder %s159, 0
      %s162 = sadd.s32 %s161, 1
      %s163 = scalar_select %p160, %s161, %s162
      %p166 = pneg %p160
      %p167 = scmp.eq.s32.totalorder %s15, 1
      %p168 = por %p166, %p167
      %p169 = scmp.ne.s32.totalorder %s161, %s164
      %p170 = scmp.eq.s32.totalorder %s15, 0
      %p171 = por %p169, %p170
      %p172 = scmp.ne.s32.totalorder %s161, %s164
      %p173 = scmp.eq.s32.totalorder %s20, 1
      %p174 = por %p172, %p173
      %p175 = scmp.ne.s32.totalorder %s164, %s165
      %p176 = scmp.eq.s32.totalorder %s20, 0
      %p177 = por %p175, %p176
      %p178 = scmp.ne.s32.totalorder %s164, %s165
      %p179 = scmp.eq.s32.totalorder %s21, 1
      %p180 = por %p178, %p179
      %p182 = scmp.ne.s32.totalorder %s165, %s181
      %p183 = scmp.eq.s32.totalorder %s21, 0
      %p184 = por %p182, %p183
      %p185 = scmp.le.s32.totalorder 1, %s15
      %p186 = scmp.lt.s32.totalorder %s15, 3
      %p187 = pnand %p185, %p186
      %p188 = pneg %p187
      // Predicated region
      $region9: #{attention_forward.1} parent=5 // pred_check
        _
      $region10: #{attention_forward.1} parent=5 // pred_check_branch
        %190 = sbr.rel (%p187) target = $region12
      $region11: #{attention_forward.1} parent=5 // pred_region
        %s191 = ssub.s32 %s15, 1
        // Predicated region
        $region13: #{attention_forward.1} parent=11 // pred_check
          %p192 = pneg %p88
        $region14: #{attention_forward.1} parent=11 // pred_check_branch
          %194 = sbr.rel (%p192) target = $region16
        $region15: #{attention_forward.1} parent=11 // pred_region
          _
        $region16: #{attention_forward.1} parent=11 // pred_fallthru
          _
        // Predicated region
        $region17: #{attention_forward.1} parent=11 // pred_check
          %p195 = pneg %p109
        $region18: #{attention_forward.1} parent=11 // pred_check_branch
          %197 = sbr.rel (%p195) target = $region20
        $region19: #{attention_forward.1} parent=11 // pred_region
          _
        $region20: #{attention_forward.1} parent=11 // pred_fallthru
          _
        // Predicated region
        $region21: #{attention_forward.1} parent=11 // pred_check
          %p198 = pneg %p130
        $region22: #{attention_forward.1} parent=11 // pred_check_branch
          %200 = sbr.rel (%p198) target = $region24
        $region23: #{attention_forward.1} parent=11 // pred_region
          _
        $region24: #{attention_forward.1} parent=11 // pred_fallthru
          _
        // Predicated region
        $region25: #{attention_forward.1} parent=11 // pred_check
          %p201 = pneg %p151
        $region26: #{attention_forward.1} parent=11 // pred_check_branch
          %203 = sbr.rel (%p201) target = $region28
        $region27: #{attention_forward.1} parent=11 // pred_region
          _
        $region28: #{attention_forward.1} parent=11 // pred_fallthru
          _
      $region12: #{attention_forward.1} parent=5 // pred_fallthru
        _
      %p204 = scmp.lt.s32.totalorder %s15, 2
      // Predicated region
      $region29: #{attention_forward.1} parent=5 // pred_check
        %p205 = pneg %p204
      $region30: #{attention_forward.1} parent=5 // pred_check_branch
        %207 = sbr.rel (%p205) target = $region32
      $region31: #{attention_forward.1} parent=5 // pred_region
        // Predicated region
        $region33: #{attention_forward.1} parent=31 // pred_check
          %p208 = pneg %p35
        $region34: #{attention_forward.1} parent=31 // pred_check_branch
          %210 = sbr.rel (%p208) target = $region36
        $region35: #{attention_forward.1} parent=31 // pred_region
          %s211 = sand.u32 %s25, 1
          %s212 = scalar_lea.sflag [#allocation3], %s211
          %s213 = sand.u32 %s25, 1
          %s214 = smul.addr %s213, 64
          %s215 = scalar_lea.vmem [#allocation2], %s214
          %s216 = smul.u32 8, %s15
          %s218 = ssub.s32 1024, 1024
          %219 = vsyncadd %s212, %s218
          %s220 = smul.addr %s216, 128
          %s221 = scalar_lea.hbm %s0, %s220
          %s222 = sshll.u32 %s215, 4
          %s223 = int_to_ptr.vmem [resolvable:$true] %s222
          %228 = dma.hbm_to_vmem [thread:$0]  %s221, 1024, %s223, %s212, 128, 128, 8
        $region36: #{attention_forward.1} parent=31 // pred_fallthru
          _
        // Predicated region
        $region37: #{attention_forward.1} parent=31 // pred_check
          %p229 = pneg %p61
        $region38: #{attention_forward.1} parent=31 // pred_check_branch
          %231 = sbr.rel (%p229) target = $region40
        $region39: #{attention_forward.1} parent=31 // pred_region
          %p232 = scmp.lt.s32.totalorder %s15, 1
          %s233 = scalar_select %p232, %s15, 1
          %s234 = smul.addr %s233, 8
          %s235 = scalar_lea.vmem %s1, %s234
        $region40: #{attention_forward.1} parent=31 // pred_fallthru
          _
      $region32: #{attention_forward.1} parent=5 // pred_fallthru
        _
      %p236 = scmp.le.s32.totalorder 1, %s15
      %p237 = scmp.lt.s32.totalorder %s15, 3
      %p238 = pnand %p236, %p237
      %p239 = pneg %p238
      // Predicated region
      $region41: #{attention_forward.1} parent=5 // pred_check
        _
      $region42: #{attention_forward.1} parent=5 // pred_check_branch
        %241 = sbr.rel (%p238) target = $region44
      $region43: #{attention_forward.1} parent=5 // pred_region
        %s242 = ssub.s32 %s15, 1
        %s243 = sand.u32 %s28, 1
        %s244 = scalar_lea.sflag [#allocation3], %s243
        %s245 = sand.u32 %s28, 1
        %s246 = smul.addr %s245, 64
        %s247 = scalar_lea.vmem [#allocation2], %s246
        // Predicated region
        $region45: #{attention_forward.1} parent=43 // pred_check
          %p248 = pneg %p41
        $region46: #{attention_forward.1} parent=43 // pred_check_branch
          %250 = sbr.rel (%p248) target = $region48
        $region47: #{attention_forward.1} parent=43 // pred_region
          %251 = dma.done %s244, 1024
        $region48: #{attention_forward.1} parent=43 // pred_fallthru
          _
        %s252 = sand.u32 %s28, 1
        %s253 = scalar_lea.sflag [#allocation3], %s252
        %s254 = sand.u32 %s28, 1
        %s255 = smul.addr %s254, 64
        %s256 = scalar_lea.vmem [#allocation2], %s255
        %p257 = pneg %p41
        %p258 = pneg %p38
        %p259 = scmp.lt.s32.totalorder %s20, 1
        %s260 = scalar_select %p259, %s20, 1
        %s261 = smul.addr %s260, 8
        %s262 = scalar_lea.vmem %s1, %s261
        %p263 = pneg %p67
        %p264 = pneg %p64
        %p265 = pneg %p88
        %p266 = pneg %p85
        %p267 = pneg %p109
        %p268 = pneg %p106
        %p269 = pneg %p130
        %p270 = pneg %p127
        %p271 = pneg %p151
        %p272 = pneg %p148
        %p273 = pneg %p177
        %p274 = pneg %p174
        %p275 = scmp.lt.s32.totalorder %s20, 1
        %s276 = scalar_select %p275, %s20, 1
        %s277 = smul.addr %s276, 8
        %s278 = scalar_lea.vmem %s6, %s277
        %s279 = smul.u32 8, %s20
        %p280 = scmp.lt.s32.totalorder %s20, 1
        %s281 = scalar_select %p280, %s20, 1
        %s282 = smul.addr %s281, 8
        %s283 = scalar_lea.vmem %s1, %s282
        %p284 = scmp.lt.s32.totalorder %s20, 1
        %s285 = scalar_select %p284, %s20, 1
        %s286 = smul.addr %s285, 8
        %s287 = scalar_lea.vmem %s6, %s286
        %v288 = vld [vmem:[%s247] sm:$0xff]
        %v289 = vld [vmem:[%s247 + $0x8] sm:$0xff]
        %v290 = vld [vmem:[%s247 + $0x10] sm:$0xff]
        %v291 = vld [vmem:[%s247 + $0x18] sm:$0xff]
        %v292 = vld [vmem:[%s247 + $0x20] sm:$0xff]
        %v293 = vld [vmem:[%s247 + $0x28] sm:$0xff]
        %v294 = vld [vmem:[%s247 + $0x30] sm:$0xff]
        %v295 = vld [vmem:[%s247 + $0x38] sm:$0xff]
        %v296 = vld [vmem:[%s2] sm:$0xff]
        %v297 = vld [vmem:[%s2 + $0x8] sm:$0xff]
        %vm298 = vcmask 130048
        %v300 = vsel %vm298, %v288, 0
        %v303 = vsel %vm298, %v289, 0
        %v306 = vsel %vm298, %v290, 0
        %v309 = vsel %vm298, %v291, 0
        %v312 = vsel %vm298, %v292, 0
        %v315 = vsel %vm298, %v293, 0
        %v318 = vsel %vm298, %v294, 0
        %v321 = vsel %vm298, %v295, 0
        %323 = vmatprep.subr.mxu0 0.0
        %324 = vmatpush1.msra.mxu0 %v296
        %325 = vmatprep.subr.mxu0 0.0
        %326 = vmatpush1.msra.mxu0 %v297
        %327 = vmatprep.subr.mxu0 0.0
        %328 = vmatpush1.msra.mxu0 0.0
        %329 = vmatprep.subr.mxu0 0.0
        %330 = vmatpush1.msra.mxu0 0.0
        %331 = vmatprep.subr.mxu0 0.0
        %332 = vmatpush1.msra.mxu0 0.0
        %333 = vmatprep.subr.mxu0 0.0
        %334 = vmatpush1.msra.mxu0 0.0
        %335 = vmatprep.subr.mxu0 0.0
        %336 = vmatpush1.msra.mxu0 0.0
        %337 = vmatprep.subr.mxu0 0.0
        %338 = vmatpush1.msra.mxu0 0.0
        %339 = vmatprep.subr.mxu0 0.0
        %340 = vmatpush1.msra.mxu0 0.0
        %341 = vmatprep.subr.mxu0 0.0
        %342 = vmatpush1.msra.mxu0 0.0
        %343 = vmatprep.subr.mxu0 0.0
        %344 = vmatpush1.msra.mxu0 0.0
        %345 = vmatprep.subr.mxu0 0.0
        %346 = vmatpush1.msra.mxu0 0.0
        %347 = vmatprep.subr.mxu0 0.0
        %348 = vmatpush1.msra.mxu0 0.0
        %349 = vmatprep.subr.mxu0 0.0
        %350 = vmatpush1.msra.mxu0 0.0
        %351 = vmatprep.subr.mxu0 0.0
        %352 = vmatpush1.msra.mxu0 0.0
        %353 = vmatprep.subr.mxu0 0.0
        %354 = vmatpush1.msra.mxu0 0.0
        %355 = vmatprep.subr.mxu0 0.0
        %356 = vmatpush1.msra.mxu0 0.0
        %357 = vmatprep.subr.mxu0 0.0
        %358 = vmatpush1.msra.mxu0 0.0
        %359 = vmatprep.subr.mxu0 0.0
        %360 = vmatpush1.msra.mxu0 0.0
        %361 = vmatprep.subr.mxu0 0.0
        %362 = vmatpush1.msra.mxu0 0.0
        %363 = vmatprep.subr.mxu0 0.0
        %364 = vmatpush1.msra.mxu0 0.0
        %365 = vmatprep.subr.mxu0 0.0
        %366 = vmatpush1.msra.mxu0 0.0
        %367 = vmatprep.subr.mxu0 0.0
        %368 = vmatpush1.msra.mxu0 0.0
        %369 = vmatprep.subr.mxu0 0.0
        %370 = vmatpush1.msra.mxu0 0.0
        %371 = vmatprep.subr.mxu0 0.0
        %372 = vmatpush1.msra.mxu0 0.0
        %373 = vmatprep.subr.mxu0 0.0
        %374 = vmatpush1.msra.mxu0 0.0
        %375 = vmatprep.subr.mxu0 0.0
        %376 = vmatpush1.msra.mxu0 0.0
        %377 = vmatprep.subr.mxu0 0.0
        %378 = vmatpush1.msra.mxu0 0.0
        %379 = vmatprep.subr.mxu0 0.0
        %380 = vmatpush1.msra.mxu0 0.0
        %381 = vmatprep.subr.mxu0 0.0
        %382 = vmatpush1.msra.mxu0 0.0
        %383 = vmatprep.subr.mxu0 0.0
        %384 = vmatpush1.msra.mxu0 0.0
        %385 = vmatprep.subr.mxu0 0.0
        %386 = vmatpush1.msra.mxu0 0.0
        %387 = vmatprep.mubr.f32.mxu0 0.0
        %388 = vmatmul.mubr.f32.gmra.mrb[0].mxu0 %v300
        %v389 = vpop.f32.mrb[0].mxu0
        %v390 = vadd.f32 0.0, %v389
        %v391 = vpop.f32.mrb[0].mxu0
        %392 = vmatprep.mubr.f32.mxu0 0.0
        %393 = vmatmul.mubr.f32.gmra.mrb[0].mxu0 %v303
        %v394 = vpop.f32.mrb[0].mxu0
        %v395 = vadd.f32 0.0, %v394
        %v396 = vpop.f32.mrb[0].mxu0
        %397 = vmatprep.mubr.f32.mxu0 0.0
        %398 = vmatmul.mubr.f32.gmra.mrb[0].mxu0 %v306
        %v399 = vpop.f32.mrb[0].mxu0
        %v400 = vadd.f32 0.0, %v399
        %v401 = vpop.f32.mrb[0].mxu0
        %402 = vmatprep.mubr.f32.mxu0 0.0
        %403 = vmatmul.mubr.f32.gmra.mrb[0].mxu0 %v309
        %v404 = vpop.f32.mrb[0].mxu0
        %v405 = vadd.f32 0.0, %v404
        %v406 = vpop.f32.mrb[0].mxu0
        %407 = vmatprep.mubr.f32.mxu0 0.0
        %408 = vmatmul.mubr.f32.gmra.mrb[0].mxu0 %v312
        %v409 = vpop.f32.mrb[0].mxu0
        %v410 = vadd.f32 0.0, %v409
        %v411 = vpop.f32.mrb[0].mxu0
        %412 = vmatprep.mubr.f32.mxu0 0.0
        %413 = vmatmul.mubr.f32.gmra.mrb[0].mxu0 %v315
        %v414 = vpop.f32.mrb[0].mxu0
        %v415 = vadd.f32 0.0, %v414
        %v416 = vpop.f32.mrb[0].mxu0
        %417 = vmatprep.mubr.f32.mxu0 0.0
        %418 = vmatmul.mubr.f32.gmra.mrb[0].mxu0 %v318
        %v419 = vpop.f32.mrb[0].mxu0
        %v420 = vadd.f32 0.0, %v419
        %v421 = vpop.f32.mrb[0].mxu0
        %422 = vmatprep.mubr.f32.mxu0 0.0
        %423 = vmatmul.mubr.f32.gmra.mrb[0].mxu0 %v321
        %v424 = vpop.f32.mrb[0].mxu0
        %v425 = vadd.f32 0.0, %v424
        %v426 = vpop.f32.mrb[0].mxu0
        %427 = vdwg.mxu0
        %v428 = vld [vmem:[%s283] sm:$0xff]
        %v429 = vld [vmem:[%s3] sm:$0xff]
        %v430 = vld [vmem:[%s3 + $0x8] sm:$0xff]
        %v431 = vld [vmem:[%s3 + $0x10] sm:$0xff]
        %v432 = vld [vmem:[%s3 + $0x18] sm:$0xff]
        %v433 = vld [vmem:[%s4] sm:$0x1]
        %v435 = vlaneseq
        %v436 = vshrl.u32 %v435, 7
        %v437 = vsub.s32 0, %v436
        %v438 = vrot.slane %v433, %v437
        %vm440 = vcmask 261120
        %v442 = vsel %vm440, %v428, 0
        %444 = vmatprep.subr.mxu0 0.0
        %445 = vmatpush1.msra.mxu0 %v429
        %446 = vmatprep.subr.mxu0 0.0
        %447 = vmatpush1.msra.mxu0 %v430
        %448 = vmatprep.subr.mxu0 0.0
        %449 = vmatpush1.msra.mxu0 %v431
        %450 = vmatprep.subr.mxu0 0.0
        %451 = vmatpush1.msra.mxu0 %v432
        %452 = vmatprep.subr.mxu0 0.0
        %453 = vmatpush1.msra.mxu0 0.0
        %454 = vmatprep.subr.mxu0 0.0
        %455 = vmatpush1.msra.mxu0 0.0
        %456 = vmatprep.subr.mxu0 0.0
        %457 = vmatpush1.msra.mxu0 0.0
        %458 = vmatprep.subr.mxu0 0.0
        %459 = vmatpush1.msra.mxu0 0.0
        %460 = vmatprep.subr.mxu0 0.0
        %461 = vmatpush1.msra.mxu0 0.0
        %462 = vmatprep.subr.mxu0 0.0
        %463 = vmatpush1.msra.mxu0 0.0
        %464 = vmatprep.subr.mxu0 0.0
        %465 = vmatpush1.msra.mxu0 0.0
        %466 = vmatprep.subr.mxu0 0.0
        %467 = vmatpush1.msra.mxu0 0.0
        %468 = vmatprep.subr.mxu0 0.0
        %469 = vmatpush1.msra.mxu0 0.0
        %470 = vmatprep.subr.mxu0 0.0
        %471 = vmatpush1.msra.mxu0 0.0
        %472 = vmatprep.subr.mxu0 0.0
        %473 = vmatpush1.msra.mxu0 0.0
        %474 = vmatprep.subr.mxu0 0.0
        %475 = vmatpush1.msra.mxu0 0.0
        %476 = vmatprep.subr.mxu0 0.0
        %477 = vmatpush1.msra.mxu0 0.0
        %478 = vmatprep.subr.mxu0 0.0
        %479 = vmatpush1.msra.mxu0 0.0
        %480 = vmatprep.subr.mxu0 0.0
        %481 = vmatpush1.msra.mxu0 0.0
        %482 = vmatprep.subr.mxu0 0.0
        %483 = vmatpush1.msra.mxu0 0.0
        %484 = vmatprep.subr.mxu0 0.0
        %485 = vmatpush1.msra.mxu0 0.0
        %486 = vmatprep.subr.mxu0 0.0
        %487 = vmatpush1.msra.mxu0 0.0
        %488 = vmatprep.subr.mxu0 0.0
        %489 = vmatpush1.msra.mxu0 0.0
        %490 = vmatprep.subr.mxu0 0.0
        %491 = vmatpush1.msra.mxu0 0.0
        %492 = vmatprep.subr.mxu0 0.0
        %493 = vmatpush1.msra.mxu0 0.0
        %494 = vmatprep.subr.mxu0 0.0
        %495 = vmatpush1.msra.mxu0 0.0
        %496 = vmatprep.subr.mxu0 0.0
        %497 = vmatpush1.msra.mxu0 0.0
        %498 = vmatprep.subr.mxu0 0.0
        %499 = vmatpush1.msra.mxu0 0.0
        %500 = vmatprep.subr.mxu0 0.0
        %501 = vmatpush1.msra.mxu0 0.0
        %502 = vmatprep.subr.mxu0 0.0
        %503 = vmatpush1.msra.mxu0 0.0
        %504 = vmatprep.subr.mxu0 0.0
        %505 = vmatpush1.msra.mxu0 0.0
        %506 = vmatprep.subr.mxu0 0.0
        %507 = vmatpush1.msra.mxu0 0.0
        %508 = vmatprep.mubr.f32.mxu0 0.0
        %509 = vmatmul.mubr.f32.gmra.mrb[0].mxu0 %v442
        %v510 = vpop.f32.mrb[0].mxu0
        %v511 = vadd.f32 %v438, %v510
        %v512 = vpop.f32.mrb[0].mxu0
        %513 = vdwg.mxu0
        %v515 = vcombine.high %v511, %v511
        %v517 = vunpack.c.l.s4 1966171168
        %v518 = vunpack.c.0.s8 %v517
        %v519 = vlaneseq
        %v520 = vshrl.u32 %v519, 7
        %v521 = vsub.s32 %v518, %v520
        %v522 = vrot.slane %v511, %v521
        %v524 = vunpack.c.l.s4 1966171168
        %v525 = vunpack.c.0.s8 %v524
        %v526 = vlaneseq
        %v527 = vshrl.u32 %v526, 7
        %v528 = vsub.s32 %v525, %v527
        %v529 = vrot.slane %v515, %v528
        %v530 = vcombine.high %v522, %v522
        %v531 = vcombine.high %v529, %v529
        %v533 = vunpack.c.l.s4 1966171168
        %v534 = vunpack.c.0.s8 %v533
        %v535 = vlaneseq
        %v536 = vshrl.u32 %v535, 7
        %v537 = vsub.s32 %v534, %v536
        %v538 = vrot.slane %v522, %v537
        %v540 = vunpack.c.l.s4 1966171168
        %v541 = vunpack.c.0.s8 %v540
        %v542 = vlaneseq
        %v543 = vshrl.u32 %v542, 7
        %v544 = vsub.s32 %v541, %v543
        %v545 = vrot.slane %v529, %v544
        %v547 = vunpack.c.l.s4 1966171168
        %v548 = vunpack.c.0.s8 %v547
        %v549 = vlaneseq
        %v550 = vshrl.u32 %v549, 7
        %v551 = vsub.s32 %v548, %v550
        %v552 = vrot.slane %v530, %v551
        %v554 = vunpack.c.l.s4 1966171168
        %v555 = vunpack.c.0.s8 %v554
        %v556 = vlaneseq
        %v557 = vshrl.u32 %v556, 7
        %v558 = vsub.s32 %v555, %v557
        %v559 = vrot.slane %v531, %v558
        %v560 = vcombine.high %v538, %v538
        %v561 = vcombine.high %v545, %v545
        %v562 = vcombine.high %v552, %v552
        %v563 = vcombine.high %v559, %v559
        %v564 = vlaneseq
        %v565 = vshrl.u32 %v564, 7
        %v566 = vsub.s32 0, %v565
        %v567 = vrot.slane %v538, %v566
        %v568 = vlaneseq
        %v569 = vshrl.u32 %v568, 7
        %v570 = vsub.s32 0, %v569
        %v571 = vrot.slane %v552, %v570
        %v572 = vlaneseq
        %v573 = vshrl.u32 %v572, 7
        %v574 = vsub.s32 0, %v573
        %v575 = vrot.slane %v560, %v574
        %v576 = vlaneseq
        %v577 = vshrl.u32 %v576, 7
        %v578 = vsub.s32 0, %v577
        %v579 = vrot.slane %v562, %v578
        %v580 = vlaneseq
        %v581 = vshrl.u32 %v580, 7
        %v582 = vsub.s32 0, %v581
        %v583 = vrot.slane %v545, %v582
        %v584 = vlaneseq
        %v585 = vshrl.u32 %v584, 7
        %v586 = vsub.s32 0, %v585
        %v587 = vrot.slane %v559, %v586
        %v588 = vlaneseq
        %v589 = vshrl.u32 %v588, 7
        %v590 = vsub.s32 0, %v589
        %v591 = vrot.slane %v561, %v590
        %v592 = vlaneseq
        %v593 = vshrl.u32 %v592, 7
        %v594 = vsub.s32 0, %v593
        %v595 = vrot.slane %v563, %v594
        %v604 = vadd.f32 %v390, %v567
        %v605 = vadd.f32 %v395, %v571
        %v606 = vadd.f32 %v400, %v575
        %v607 = vadd.f32 %v405, %v579
        %v608 = vadd.f32 %v410, %v583
        %v609 = vadd.f32 %v415, %v587
        %v610 = vadd.f32 %v420, %v591
        %v611 = vadd.f32 %v425, %v595
        %v612 = vmax.f32 %v604, 0.0
        %v613 = vmax.f32 %v605, 0.0
        %v614 = vmax.f32 %v606, 0.0
        %v615 = vmax.f32 %v607, 0.0
        %v616 = vmax.f32 %v608, 0.0
        %v617 = vmax.f32 %v609, 0.0
        %v618 = vmax.f32 %v610, 0.0
        %v619 = vmax.f32 %v611, 0.0
        %v620 = vld [vmem:[%s5] sm:$0x1]
        %v622 = vlaneseq
        %v623 = vshrl.u32 %v622, 7
        %v624 = vsub.s32 0, %v623
        %v625 = vrot.slane %v620, %v624
        %v627 = vmul.f32 %v612, %v625
        %v628 = vmul.f32 %v613, %v625
        %v629 = vmul.f32 %v614, %v625
        %v630 = vmul.f32 %v615, %v625
        %v631 = vmul.f32 %v616, %v625
        %v632 = vmul.f32 %v617, %v625
        %v633 = vmul.f32 %v618, %v625
        %v634 = vmul.f32 %v619, %v625
        %v635 = vsel %vm440, %v627, 0.0
        %636 = vadd.xlane.f32.xlu0 %v635
        %v637 = vpop.xlane.xlu0 %636
        %v638 = vsel %vm440, %v628, 0.0
        %639 = vadd.xlane.f32.xlu0 %v638
        %v640 = vpop.xlane.xlu0 %639
        %v641 = vsel %vm440, %v629, 0.0
        %642 = vadd.xlane.f32.xlu0 %v641
        %v643 = vpop.xlane.xlu0 %642
        %v644 = vsel %vm440, %v630, 0.0
        %645 = vadd.xlane.f32.xlu0 %v644
        %v646 = vpop.xlane.xlu0 %645
        %v647 = vsel %vm440, %v631, 0.0
        %648 = vadd.xlane.f32.xlu0 %v647
        %v649 = vpop.xlane.xlu0 %648
        %v650 = vsel %vm440, %v632, 0.0
        %651 = vadd.xlane.f32.xlu0 %v650
        %v652 = vpop.xlane.xlu0 %651
        %v653 = vsel %vm440, %v633, 0.0
        %654 = vadd.xlane.f32.xlu0 %v653
        %v655 = vpop.xlane.xlu0 %654
        %v656 = vsel %vm440, %v634, 0.0
        %657 = vadd.xlane.f32.xlu0 %v656
        %v658 = vpop.xlane.xlu0 %657
        %v667 = vlaneseq
        %v668 = vand.u32 %v667, 127
        %v669 = vlaneseq
        %v670 = vshrl.u32 %v669, 7
        %v671 = vsub.s32 %v668, %v670
        %v672 = vrot.slane %v637, %v671
        %v673 = vlaneseq
        %v674 = vshrl.u32 %v673, 7
        %v675 = vsub.s32 %v668, %v674
        %v676 = vrot.slane %v640, %v675
        %v677 = vlaneseq
        %v678 = vshrl.u32 %v677, 7
        %v679 = vsub.s32 %v668, %v678
        %v680 = vrot.slane %v643, %v679
        %v681 = vlaneseq
        %v682 = vshrl.u32 %v681, 7
        %v683 = vsub.s32 %v668, %v682
        %v684 = vrot.slane %v646, %v683
        %v685 = vlaneseq
        %v686 = vshrl.u32 %v685, 7
        %v687 = vsub.s32 %v668, %v686
        %v688 = vrot.slane %v649, %v687
        %v689 = vlaneseq
        %v690 = vshrl.u32 %v689, 7
        %v691 = vsub.s32 %v668, %v690
        %v692 = vrot.slane %v652, %v691
        %v693 = vlaneseq
        %v694 = vshrl.u32 %v693, 7
        %v695 = vsub.s32 %v668, %v694
        %v696 = vrot.slane %v655, %v695
        %v697 = vlaneseq
        %v698 = vshrl.u32 %v697, 7
        %v699 = vsub.s32 %v668, %v698
        %v700 = vrot.slane %v658, %v699
        %vm701 = vcmask 1041409
        %v702 = vsel %vm701, %v676, %v672
        %vm703 = vcmask 1042434
        %v704 = vsel %vm703, %v680, %v702
        %vm705 = vcmask 1043459
        %v706 = vsel %vm705, %v684, %v704
        %vm707 = vcmask 1044484
        %v708 = vsel %vm707, %v688, %v706
        %vm709 = vcmask 1045509
        %v710 = vsel %vm709, %v692, %v708
        %vm711 = vcmask 1046534
        %v712 = vsel %vm711, %v696, %v710
        %vm713 = vcmask 1047559
        %v714 = vsel %vm713, %v700, %v712
        %vm716 = vcmask 64512
        %v717 = vsel %vm716, %v714, -inf
        %718 = vmax.xlane.f32.xlu0 %v717
        %v719 = vpop.xlane.xlu0 %718
        %v721 = vlaneseq
        %v722 = vshrl.u32 %v721, 7
        %v723 = vsub.s32 0, %v722
        %v724 = vrot.slane %v719, %v723
        %v725 = vlaneseq
        %v726 = vshrl.u32 %v725, 7
        %v727 = vsub.s32 1, %v726
        %v728 = vrot.slane %v719, %v727
        %v729 = vlaneseq
        %v730 = vshrl.u32 %v729, 7
        %v731 = vsub.s32 2, %v730
        %v732 = vrot.slane %v719, %v731
        %v733 = vlaneseq
        %v734 = vshrl.u32 %v733, 7
        %v735 = vsub.s32 3, %v734
        %v736 = vrot.slane %v719, %v735
        %v737 = vlaneseq
        %v738 = vshrl.u32 %v737, 7
        %v739 = vsub.s32 4, %v738
        %v740 = vrot.slane %v719, %v739
        %v741 = vlaneseq
        %v742 = vshrl.u32 %v741, 7
        %v743 = vsub.s32 5, %v742
        %v744 = vrot.slane %v719, %v743
        %v745 = vlaneseq
        %v746 = vshrl.u32 %v745, 7
        %v747 = vsub.s32 6, %v746
        %v748 = vrot.slane %v719, %v747
        %v749 = vlaneseq
        %v750 = vshrl.u32 %v749, 7
        %v751 = vsub.s32 7, %v750
        %v752 = vrot.slane %v719, %v751
        %v761 = vsub.f32 %v637, %v724
        %v762 = vsub.f32 %v640, %v728
        %v763 = vsub.f32 %v643, %v732
        %v764 = vsub.f32 %v646, %v736
        %v765 = vsub.f32 %v649, %v740
        %v766 = vsub.f32 %v652, %v744
        %v767 = vsub.f32 %v655, %v748
        %v768 = vsub.f32 %v658, %v752
        %v769 = vmul.f32 %v761, 1.442695
        %v770 = vpow.pop %v769
        %v771 = vmul.f32 %v762, 1.442695
        %v772 = vpow.pop %v771
        %v773 = vmul.f32 %v763, 1.442695
        %v774 = vpow.pop %v773
        %v775 = vmul.f32 %v764, 1.442695
        %v776 = vpow.pop %v775
        %v777 = vmul.f32 %v765, 1.442695
        %v778 = vpow.pop %v777
        %v779 = vmul.f32 %v766, 1.442695
        %v780 = vpow.pop %v779
        %v781 = vmul.f32 %v767, 1.442695
        %v782 = vpow.pop %v781
        %v783 = vmul.f32 %v768, 1.442695
        %v784 = vpow.pop %v783
        %793 = vset.pattern.permute.xlu0 0
        %794 = vperm.xlu0 %793, %v770
        %v795 = vpop.permute.xlu0 %794
        %796 = vset.pattern.permute.xlu0 0
        %797 = vperm.xlu0 %796, %v772
        %v798 = vpop.permute.xlu0 %797
        %799 = vset.pattern.permute.xlu0 0
        %800 = vperm.xlu0 %799, %v774
        %v801 = vpop.permute.xlu0 %800
        %802 = vset.pattern.permute.xlu0 0
        %803 = vperm.xlu0 %802, %v776
        %v804 = vpop.permute.xlu0 %803
        %805 = vset.pattern.permute.xlu0 0
        %806 = vperm.xlu0 %805, %v778
        %v807 = vpop.permute.xlu0 %806
        %808 = vset.pattern.permute.xlu0 0
        %809 = vperm.xlu0 %808, %v780
        %v810 = vpop.permute.xlu0 %809
        %811 = vset.pattern.permute.xlu0 0
        %812 = vperm.xlu0 %811, %v782
        %v813 = vpop.permute.xlu0 %812
        %814 = vset.pattern.permute.xlu0 0
        %815 = vperm.xlu0 %814, %v784
        %v816 = vpop.permute.xlu0 %815
        %v817 = vlaneseq
        %v818 = vshrl.u32 %v817, 7
        %v819 = vsub.s32 %v668, %v818
        %v820 = vrot.slane %v795, %v819
        %v821 = vlaneseq
        %v822 = vshrl.u32 %v821, 7
        %v823 = vsub.s32 %v668, %v822
        %v824 = vrot.slane %v798, %v823
        %v825 = vlaneseq
        %v826 = vshrl.u32 %v825, 7
        %v827 = vsub.s32 %v668, %v826
        %v828 = vrot.slane %v801, %v827
        %v829 = vlaneseq
        %v830 = vshrl.u32 %v829, 7
        %v831 = vsub.s32 %v668, %v830
        %v832 = vrot.slane %v804, %v831
        %v833 = vlaneseq
        %v834 = vshrl.u32 %v833, 7
        %v835 = vsub.s32 %v668, %v834
        %v836 = vrot.slane %v807, %v835
        %v837 = vlaneseq
        %v838 = vshrl.u32 %v837, 7
        %v839 = vsub.s32 %v668, %v838
        %v840 = vrot.slane %v810, %v839
        %v841 = vlaneseq
        %v842 = vshrl.u32 %v841, 7
        %v843 = vsub.s32 %v668, %v842
        %v844 = vrot.slane %v813, %v843
        %v845 = vlaneseq
        %v846 = vshrl.u32 %v845, 7
        %v847 = vsub.s32 %v668, %v846
        %v848 = vrot.slane %v816, %v847
        %v849 = vsel %vm701, %v824, %v820
        %v850 = vsel %vm703, %v828, %v849
        %v851 = vsel %vm705, %v832, %v850
        %v852 = vsel %vm707, %v836, %v851
        %v853 = vsel %vm709, %v840, %v852
        %v854 = vsel %vm711, %v844, %v853
        %v855 = vsel %vm713, %v848, %v854
        %v857 = vsel %vm716, %v855, 0.0
        %858 = vadd.xlane.f32.xlu0 %v857
        %v859 = vpop.xlane.xlu0 %858
        %v860 = vmul.f32 %v859, 2.0
        %v862 = vlaneseq
        %v863 = vshrl.u32 %v862, 7
        %v864 = vsub.s32 0, %v863
        %v865 = vrot.slane %v860, %v864
        %v866 = vlaneseq
        %v867 = vshrl.u32 %v866, 7
        %v868 = vsub.s32 1, %v867
        %v869 = vrot.slane %v860, %v868
        %v870 = vlaneseq
        %v871 = vshrl.u32 %v870, 7
        %v872 = vsub.s32 2, %v871
        %v873 = vrot.slane %v860, %v872
        %v874 = vlaneseq
        %v875 = vshrl.u32 %v874, 7
        %v876 = vsub.s32 3, %v875
        %v877 = vrot.slane %v860, %v876
        %v878 = vlaneseq
        %v879 = vshrl.u32 %v878, 7
        %v880 = vsub.s32 4, %v879
        %v881 = vrot.slane %v860, %v880
        %v882 = vlaneseq
        %v883 = vshrl.u32 %v882, 7
        %v884 = vsub.s32 5, %v883
        %v885 = vrot.slane %v860, %v884
        %v886 = vlaneseq
        %v887 = vshrl.u32 %v886, 7
        %v888 = vsub.s32 6, %v887
        %v889 = vrot.slane %v860, %v888
        %v890 = vlaneseq
        %v891 = vshrl.u32 %v890, 7
        %v892 = vsub.s32 7, %v891
        %v893 = vrot.slane %v860, %v892
        %v902 = vrcp.pop %v865
        %v903 = vmul.f32 %v770, %v902
        %v904 = vrcp.pop %v869
        %v905 = vmul.f32 %v772, %v904
        %v906 = vrcp.pop %v873
        %v907 = vmul.f32 %v774, %v906
        %v908 = vrcp.pop %v877
        %v909 = vmul.f32 %v776, %v908
        %v910 = vrcp.pop %v881
        %v911 = vmul.f32 %v778, %v910
        %v912 = vrcp.pop %v885
        %v913 = vmul.f32 %v780, %v912
        %v914 = vrcp.pop %v889
        %v915 = vmul.f32 %v782, %v914
        %v916 = vrcp.pop %v893
        %v917 = vmul.f32 %v784, %v916
        %926 = vset.pattern.permute.xlu0 0
        %927 = vperm.xlu0 %926, %v903
        %v928 = vpop.permute.xlu0 %927
        %929 = vset.pattern.permute.xlu0 0
        %930 = vperm.xlu0 %929, %v905
        %v931 = vpop.permute.xlu0 %930
        %932 = vset.pattern.permute.xlu0 0
        %933 = vperm.xlu0 %932, %v907
        %v934 = vpop.permute.xlu0 %933
        %935 = vset.pattern.permute.xlu0 0
        %936 = vperm.xlu0 %935, %v909
        %v937 = vpop.permute.xlu0 %936
        %938 = vset.pattern.permute.xlu0 0
        %939 = vperm.xlu0 %938, %v911
        %v940 = vpop.permute.xlu0 %939
        %941 = vset.pattern.permute.xlu0 0
        %942 = vperm.xlu0 %941, %v913
        %v943 = vpop.permute.xlu0 %942
        %944 = vset.pattern.permute.xlu0 0
        %945 = vperm.xlu0 %944, %v915
        %v946 = vpop.permute.xlu0 %945
        %947 = vset.pattern.permute.xlu0 0
        %948 = vperm.xlu0 %947, %v917
        %v949 = vpop.permute.xlu0 %948
        %v950 = vlaneseq
        %v951 = vshrl.u32 %v950, 7
        %v952 = vsub.s32 %v668, %v951
        %v953 = vrot.slane %v928, %v952
        %v954 = vlaneseq
        %v955 = vshrl.u32 %v954, 7
        %v956 = vsub.s32 %v668, %v955
        %v957 = vrot.slane %v931, %v956
        %v958 = vlaneseq
        %v959 = vshrl.u32 %v958, 7
        %v960 = vsub.s32 %v668, %v959
        %v961 = vrot.slane %v934, %v960
        %v962 = vlaneseq
        %v963 = vshrl.u32 %v962, 7
        %v964 = vsub.s32 %v668, %v963
        %v965 = vrot.slane %v937, %v964
        %v966 = vlaneseq
        %v967 = vshrl.u32 %v966, 7
        %v968 = vsub.s32 %v668, %v967
        %v969 = vrot.slane %v940, %v968
        %v970 = vlaneseq
        %v971 = vshrl.u32 %v970, 7
        %v972 = vsub.s32 %v668, %v971
        %v973 = vrot.slane %v943, %v972
        %v974 = vlaneseq
        %v975 = vshrl.u32 %v974, 7
        %v976 = vsub.s32 %v668, %v975
        %v977 = vrot.slane %v946, %v976
        %v978 = vlaneseq
        %v979 = vshrl.u32 %v978, 7
        %v980 = vsub.s32 %v668, %v979
        %v981 = vrot.slane %v949, %v980
        %v982 = vsel %vm701, %v957, %v953
        %v983 = vsel %vm703, %v961, %v982
        %v984 = vsel %vm705, %v965, %v983
        %v985 = vsel %vm707, %v969, %v984
        %v986 = vsel %vm709, %v973, %v985
        %v987 = vsel %vm711, %v977, %v986
        %v988 = vsel %vm713, %v981, %v987
        %990 = vst.msk [vmem:[%s287] sm:$0xff] %vm716, %v988
        %p991 = scmp.lt.s32.totalorder %s20, 1
        %s992 = scalar_select %p991, %s20, 1
        %s993 = smul.addr %s992, 8
        %s994 = scalar_lea.vmem %s6, %s993
        // Predicated region
        $region49: #{attention_forward.1} parent=43 // pred_check
          %p995 = pneg %p174
        $region50: #{attention_forward.1} parent=43 // pred_check_branch
          %997 = sbr.rel (%p995) target = $region52
        $region51: #{attention_forward.1} parent=43 // pred_region
          _
        $region52: #{attention_forward.1} parent=43 // pred_fallthru
          _
      $region44: #{attention_forward.1} parent=5 // pred_fallthru
        _
      %p998 = scmp.le.s32.totalorder 2, %s15
      // Predicated region
      $region53: #{attention_forward.1} parent=5 // pred_check
        %p999 = pneg %p998
      $region54: #{attention_forward.1} parent=5 // pred_check_branch
        %1001 = sbr.rel (%p999) target = $region56
      $region55: #{attention_forward.1} parent=5 // pred_region
        %s1002 = ssub.s32 %s15, 2
        // Predicated region
        $region57: #{attention_forward.1} parent=55 // pred_check
          %p1003 = pneg %p180
        $region58: #{attention_forward.1} parent=55 // pred_check_branch
          %1005 = sbr.rel (%p1003) target = $region60
        $region59: #{attention_forward.1} parent=55 // pred_region
          %p1006 = scmp.lt.s32.totalorder %s21, 1
          %s1007 = scalar_select %p1006, %s21, 1
          %s1008 = smul.addr %s1007, 8
          %s1009 = scalar_lea.vmem %s6, %s1008
        $region60: #{attention_forward.1} parent=55 // pred_fallthru
          _
      $region56: #{attention_forward.1} parent=5 // pred_fallthru
        _
    $region6: #{attention_forward.1} parent=1 // loop_footer
      %s19 = sadd.s32 1, %s15
    $region7: #{attention_forward.1} parent=1 // loop_footer_branch
      %14 = sbr.rel target = $region3
    $region8: #{attention_forward.1} parent=1 // loop_exit
      _
    %1010 = vsyncpa [#allocation3], 1
    %s1011 = scalar_lea.sflag [#allocation3], 1
    %1012 = vsyncpa %s1011, 1

</llo_original>
